<compile_context>
chip_gen: v6e
topology: v6e:2x2x1
jax: 0.10.0
libtpu: 0.0.40
codegen_flags: <defaults>
</compile_context>

<pallas_src>
import jax
import jax.numpy as jnp
from jax.experimental import pallas as pl
from jax.experimental.pallas import tpu as pltpu

# Fixed-point format parameters (FixedPoint(wl=8, fl=4), clamp=True, symmetric=False)
WL = 8
FL = 4

_LANES = 128


def _uniform_from_index(idx_u32, seed_u32):
    """Counter-based hash -> uniform floats in [0, 1).

    Pure jnp integer mixing so it lowers both through Mosaic (TPU) and the
    CPU interpreter.  Randomness is a pure function of (seed, global element
    index): deterministic, grid-order independent, no overlapping streams
    between nearby seeds.
    """
    h = idx_u32 ^ (seed_u32 * jnp.uint32(0x9E3779B9))
    h = (h ^ (h >> 16)) * jnp.uint32(0x7FEB352D)
    h = (h ^ (h >> 15)) * jnp.uint32(0x846CA68B)
    h = h ^ (h >> 16)
    # Top 24 bits -> uniform in [0, 1), exactly representable in f32.
    return (h >> 8).astype(jnp.int32).astype(jnp.float32) * jnp.float32(1.0 / (1 << 24))


def _fixed_point_quantize(x_f32, u):
    """Scale, stochastic round (floor(x*2^fl + u)), clamp, rescale."""
    scale = jnp.float32(2.0 ** FL)
    r = jnp.floor(x_f32 * scale + u)
    t_min = jnp.float32(-(2.0 ** (WL - 1)))
    t_max = jnp.float32(2.0 ** (WL - 1) - 1.0)
    r = jnp.clip(r, t_min, t_max)
    return r * jnp.float32(2.0 ** (-FL))


def _fixed_point_stochastic_kernel(seed_ref, x_ref, o_ref):
    """Quantize one (block_rows, 128) tile with stochastic rounding."""
    block_rows, lanes = x_ref.shape
    seed = seed_ref[0].astype(jnp.uint32)
    row0 = (pl.program_id(0) * block_rows).astype(jnp.uint32)

    r_iota = jax.lax.broadcasted_iota(jnp.int32, (block_rows, lanes), 0).astype(jnp.uint32)
    c_iota = jax.lax.broadcasted_iota(jnp.int32, (block_rows, lanes), 1).astype(jnp.uint32)
    idx = (row0 + r_iota) * jnp.uint32(lanes) + c_iota

    u = _uniform_from_index(idx, seed)
    q = _fixed_point_quantize(x_ref[...].astype(jnp.float32), u)
    o_ref[...] = q.astype(o_ref.dtype)


@jax.jit
def _quantize_fixed_point_stochastic(x, seed_arr):
    orig_shape = x.shape
    orig_dtype = x.dtype
    n = x.size
    if n == 0:
        return x

    flat = x.reshape(-1)  # no dtype cast here; the kernel casts per tile

    rows_total = n // _LANES
    itemsize = jnp.dtype(orig_dtype).itemsize
    # ~1 MiB tiles: far past the per-grid-step-overhead knee; double-buffered
    # in+out stays well under the smallest scoped-VMEM budgets (v5e / v7x).
    max_block_rows = max(32, ((1 << 20) // (_LANES * itemsize)) // 32 * 32)

    if rows_total >= 8:
        block_rows = min(max_block_rows, rows_total)
        main_rows = (rows_total // block_rows) * block_rows
    else:
        block_rows = 0
        main_rows = 0
    n_main = main_rows * _LANES

    parts = []
    if main_rows > 0:
        x_main = (flat if n_main == n else flat[:n_main]).reshape(main_rows, _LANES)
        out_main = pl.pallas_call(
            _fixed_point_stochastic_kernel,
            out_shape=jax.ShapeDtypeStruct((main_rows, _LANES), orig_dtype),
            grid_spec=pltpu.PrefetchScalarGridSpec(
                num_scalar_prefetch=1,
                grid=(main_rows // block_rows,),
                in_specs=[pl.BlockSpec((block_rows, _LANES), lambda i, s: (i, 0))],
                out_specs=pl.BlockSpec((block_rows, _LANES), lambda i, s: (i, 0)),
            ),
            compiler_params=pltpu.CompilerParams(
                dimension_semantics=("parallel",),
                vmem_limit_bytes=32 * 1024 * 1024,
            ),
        )(seed_arr, x_main)
        parts.append(out_main.reshape(-1))

    if n_main < n:
        # Ragged tail (< one tile): quantize in plain JAX with the same
        # counter-based randomness so the result is independent of tiling.
        tail = flat[n_main:]
        idx = jnp.arange(n - n_main, dtype=jnp.uint32) + jnp.uint32(n_main)
        u = _uniform_from_index(idx, seed_arr[0].astype(jnp.uint32))
        parts.append(_fixed_point_quantize(tail.astype(jnp.float32), u).astype(orig_dtype))

    out_flat = parts[0] if len(parts) == 1 else jnp.concatenate(parts)
    return out_flat.reshape(orig_shape)


class Quantizer:
    """JAX/Pallas analogue of qtorch.quant.Quantizer (forward pass only).

    forward_number is either None (identity, qtorch's default) or the tuple
    ("fixed", wl, fl) handled by the Pallas kernel above.
    """

    def __init__(self, forward_number=("fixed", WL, FL), backward_number=None,
                 forward_rounding="stochastic", backward_rounding="stochastic"):
        assert forward_rounding in ("stochastic", "nearest")
        self.forward_number = forward_number
        self.forward_rounding = forward_rounding
        # TODO(synk): backward_number / backward_rounding only affect qtorch's
        # custom autograd backward; forward semantics are unchanged.

    def __call__(self, x, seed=0):
        if self.forward_number is None:
            return x
        if self.forward_rounding == "stochastic":
            seed_arr = jnp.asarray([seed], dtype=jnp.int32)
            return _quantize_fixed_point_stochastic(x, seed_arr)
        # Nearest rounding fallback (not the module default) in plain JAX.
        # TODO(synk): jnp.round ties to even; qtorch's CUDA round() ties away from zero.
        scale = 2.0 ** FL
        r = jnp.round(x * scale)
        r = jnp.clip(r, -(2.0 ** (WL - 1)), 2.0 ** (WL - 1) - 1.0)
        return (r / scale).astype(x.dtype)


if __name__ == "__main__":
    key = jax.random.PRNGKey(0)
    x = jax.random.normal(key, (2, 4, 16, 16), dtype=jnp.float32)  # NCHW

    quant = Quantizer(forward_number=("fixed", WL, FL),
                      forward_rounding="stochastic")
    y = quant(x, seed=0)
    y = jax.block_until_ready(y)

    # Sanity checks: quantized values are multiples of 2^-FL, inside the
    # representable range, and within one ULP of the (clamped) input.
    step = 2.0 ** (-FL)
    t_min = -(2.0 ** (WL - FL - 1))
    t_max = 2.0 ** (WL - FL - 1) - step
    frac = y / step - jnp.round(y / step)
    assert float(jnp.max(jnp.abs(frac))) < 1e-5
    assert float(jnp.min(y)) >= t_min - 1e-6
    assert float(jnp.max(y)) <= t_max + 1e-6
    x_clamped = jnp.clip(x, t_min, t_max)
    assert float(jnp.max(jnp.abs(y - x_clamped))) <= step + 1e-6
    assert y.shape == x.shape and y.dtype == x.dtype

    print("KERNEL_OK")
</pallas_src>

<mosaic_0001>
module attributes {stable_mosaic.version = 11 : i64} {
  func.func @_fixed_point_stochastic_kernel(%arg0: i32, %arg1: memref<1xi32, #tpu.memory_space<smem>>, %arg2: memref<16x128xf32, #tpu.memory_space<vmem>>, %arg3: memref<16x128xf32, #tpu.memory_space<vmem>>) attributes {dimension_semantics = [#tpu.dimension_semantics<parallel>], iteration_bounds = array<i64: 1>, scalar_prefetch = 1 : i64, scratch_operands = 0 : i64, tpu.core_type = #tpu.core_type<tc>, window_params = [{transform_indices = @transform_0, window_bounds = array<i64: 16, 128>}, {transform_indices = @transform_1, window_bounds = array<i64: 16, 128>}]} {
    %c0 = arith.constant 0 : index
    %0 = memref.load %arg1[%c0] : memref<1xi32, #tpu.memory_space<smem>>
    %c16_i32 = arith.constant 16 : i32
    %1 = arith.muli %arg0, %c16_i32 : i32
    %2 = tpu.iota {dimensions = array<i32: 0>} : vector<16x128xi32>
    %3 = tpu.iota {dimensions = array<i32: 1>} : vector<16x128xi32>
    %4 = vector.broadcast %1 : i32 to vector<16x128xi32>
    %5 = arith.addi %4, %2 : vector<16x128xi32>
    %c128_i32 = arith.constant 128 : i32
    %6 = vector.broadcast %c128_i32 : i32 to vector<16x128xi32>
    %7 = arith.muli %5, %6 : vector<16x128xi32>
    %8 = arith.addi %7, %3 : vector<16x128xi32>
    %c-1640531527_i32 = arith.constant -1640531527 : i32
    %9 = arith.muli %0, %c-1640531527_i32 : i32
    %10 = vector.broadcast %9 : i32 to vector<16x128xi32>
    %11 = arith.xori %8, %10 : vector<16x128xi32>
    %c16_i32_0 = arith.constant 16 : i32
    %12 = vector.broadcast %c16_i32_0 : i32 to vector<16x128xi32>
    %13 = arith.shrui %11, %12 : vector<16x128xi32>
    %14 = arith.xori %11, %13 : vector<16x128xi32>
    %c2146121005_i32 = arith.constant 2146121005 : i32
    %15 = vector.broadcast %c2146121005_i32 : i32 to vector<16x128xi32>
    %16 = arith.muli %14, %15 : vector<16x128xi32>
    %c15_i32 = arith.constant 15 : i32
    %17 = vector.broadcast %c15_i32 : i32 to vector<16x128xi32>
    %18 = arith.shrui %16, %17 : vector<16x128xi32>
    %19 = arith.xori %16, %18 : vector<16x128xi32>
    %c-2073254261_i32 = arith.constant -2073254261 : i32
    %20 = vector.broadcast %c-2073254261_i32 : i32 to vector<16x128xi32>
    %21 = arith.muli %19, %20 : vector<16x128xi32>
    %c16_i32_1 = arith.constant 16 : i32
    %22 = vector.broadcast %c16_i32_1 : i32 to vector<16x128xi32>
    %23 = arith.shrui %21, %22 : vector<16x128xi32>
    %24 = arith.xori %21, %23 : vector<16x128xi32>
    %c8_i32 = arith.constant 8 : i32
    %25 = vector.broadcast %c8_i32 : i32 to vector<16x128xi32>
    %26 = arith.shrui %24, %25 : vector<16x128xi32>
    %27 = arith.sitofp %26 : vector<16x128xi32> to vector<16x128xf32>
    %cst = arith.constant 5.96046448E-8 : f32
    %28 = vector.broadcast %cst : f32 to vector<16x128xf32>
    %29 = arith.mulf %27, %28 : vector<16x128xf32>
    %c0_2 = arith.constant 0 : index
    %c0_3 = arith.constant 0 : index
    %30 = vector.load %arg2[%c0_2, %c0_3] : memref<16x128xf32, #tpu.memory_space<vmem>>, vector<16x128xf32>
    %cst_4 = arith.constant 1.600000e+01 : f32
    %31 = vector.broadcast %cst_4 : f32 to vector<16x128xf32>
    %32 = arith.mulf %30, %31 : vector<16x128xf32>
    %33 = arith.addf %32, %29 : vector<16x128xf32>
    %34 = math.floor %33 : vector<16x128xf32>
    %cst_5 = arith.constant -1.280000e+02 : f32
    %cst_6 = arith.constant 1.270000e+02 : f32
    %35 = vector.broadcast %cst_5 : f32 to vector<16x128xf32>
    %36 = arith.maximumf %35, %34 : vector<16x128xf32>
    %37 = vector.broadcast %cst_6 : f32 to vector<16x128xf32>
    %38 = arith.minimumf %37, %36 : vector<16x128xf32>
    %cst_7 = arith.constant 6.250000e-02 : f32
    %39 = vector.broadcast %cst_7 : f32 to vector<16x128xf32>
    %40 = arith.mulf %38, %39 : vector<16x128xf32>
    %c0_8 = arith.constant 0 : index
    %c0_9 = arith.constant 0 : index
    %41 = vector.load %arg3[%c0_8, %c0_9] : memref<16x128xf32, #tpu.memory_space<vmem>>, vector<16x128xf32>
    tpu.vector_store %arg3[%c0_8, %c0_9], %40 {strides = array<i32>} : memref<16x128xf32, #tpu.memory_space<vmem>>, vector<16x128xf32>,
    return
  }
  func.func @transform_0(%arg0: i32, %arg1: memref<1xi32, #tpu.memory_space<smem>>) -> (i32, i32) {
    %c0_i32 = arith.constant 0 : i32
    %c0_i32_0 = arith.constant 0 : i32
    return %arg0, %c0_i32 : i32, i32
  }
  func.func @transform_1(%arg0: i32, %arg1: memref<1xi32, #tpu.memory_space<smem>>) -> (i32, i32) {
    %c0_i32 = arith.constant 0 : i32
    %c0_i32_0 = arith.constant 0 : i32
    return %arg0, %c0_i32 : i32, i32
  }
}

</mosaic_0001>

<llo_original>
// kernel: _quantize_fixed_point_stochastic.1
$region0: #{_quantize_fixed_point_stochastic.1}
  #allocation0 [shape = 'u32[]', space=smem, size = 0x4, offset = 0x4, fixed_abs, tag = 'smem constant byte address 0x4 - core index']
  #allocation1 [shape = 'u32[144,128]{1,0:T(1,128)}', space=vmem, size = 0x12000, scoped, tag = 'internal scratch']
  #allocation2 [shape = 's32[1]{0}', space=sflag, size = 0x4, scoped, tag = 'scoped memory for _quantize_fixed_point_stochastic.1']
  #allocation3 [shape = 's32[1]{0:T(128)S(6)}', space=smem, size = 0x200, scoped, tag = 'prefetched SMEM operand 0']
  %s0 = inlined_call_operand.<no memory space> [shape: s32[1], index: 0, kind: input, shape index: {}]
  %s1 = inlined_call_operand.vmem [shape: f32[16,128], index: 1, kind: input, shape index: {}]
  %s2 = inlined_call_operand.vmem [shape: f32[16,128], index: 2, kind: output, shape index: {}]
  %s3 = sld [smem:[#allocation0]]
  $region14: #{_quantize_fixed_point_stochastic.1} parent=0
    _
  %s5 = ssub.s32 1, %s3
  %s6 = scalar_select 0, %s5, %s3
  %7 = sst [smem:[#allocation3]] %s0
  // Predicated region
  $region2: #{_quantize_fixed_point_stochastic.1} parent=0 // pred_check
    _
  $region3: #{_quantize_fixed_point_stochastic.1} parent=0 // pred_check_branch
    %9 = sbr.rel (0) target = $region5
  $region4: #{_quantize_fixed_point_stochastic.1} parent=0 // pred_region
    _
  $region5: #{_quantize_fixed_point_stochastic.1} parent=0 // pred_fallthru
    _
  %s10 = sld [smem:[#allocation3]]
  %s11 = smul.u32 0, 16
  %v12 = vlaneseq
  %v13 = vshrl.u32 %v12, 7
  %v14 = vadd.s32 %v13, 8
  %v15 = vlaneseq
  %v16 = vand.u32 %v15, 127
  %v17 = vstv %s11
  %v18 = vadd.s32 %v17, %v13
  %v19 = vadd.s32 %v17, %v14
  %v20 = vmul.u32 %v18, 128
  %v21 = vmul.u32 %v19, 128
  %v22 = vadd.s32 %v20, %v16
  %v23 = vadd.s32 %v21, %v16
  %s24 = smul.u32 %s10, 2654435769
  %v25 = vstv %s24
  %v26 = vxor.u32 %v22, %v25
  %v27 = vxor.u32 %v23, %v25
  %v28 = vshrl.u32 %v26, 16
  %v29 = vshrl.u32 %v27, 16
  %v30 = vxor.u32 %v26, %v28
  %v31 = vxor.u32 %v27, %v29
  %v32 = vmul.u32 %v30, 2146121005
  %v33 = vmul.u32 %v31, 2146121005
  %v34 = vshrl.u32 %v32, 15
  %v35 = vshrl.u32 %v33, 15
  %v36 = vxor.u32 %v32, %v34
  %v37 = vxor.u32 %v33, %v35
  %v38 = vmul.u32 %v36, 2221713035
  %v39 = vmul.u32 %v37, 2221713035
  %v40 = vshrl.u32 %v38, 16
  %v41 = vshrl.u32 %v39, 16
  %v42 = vxor.u32 %v38, %v40
  %v43 = vxor.u32 %v39, %v41
  %v44 = vshrl.u32 %v42, 8
  %v45 = vshrl.u32 %v43, 8
  %v46 = vcvt.s32.f32 %v44
  %v47 = vcvt.s32.f32 %v45
  %v48 = vmul.f32 %v46, 5.9604645e-08
  %v49 = vmul.f32 %v47, 5.9604645e-08
  %v50 = vld [vmem:[%s1] sm:$0xff]
  %v51 = vld [vmem:[%s1 + $0x8] sm:$0xff]
  %v52 = vmul.f32 %v50, 16.0
  %v53 = vmul.f32 %v51, 16.0
  %v54 = vadd.f32 %v52, %v48
  %v55 = vadd.f32 %v53, %v49
  %v56 = vfloor.f32 %v54
  %v57 = vfloor.f32 %v55
  %v58 = vmax.f32 %v56, -128.0
  %v59 = vmax.f32 %v57, -128.0
  %v60 = vmin.f32 %v58, 127.0
  %v61 = vmin.f32 %v59, 127.0
  %v62 = vmul.f32 %v60, 0.0625
  %v63 = vmul.f32 %v61, 0.0625
  %64 = vst [vmem:[%s2] sm:$0xff] %v62
  %65 = vst [vmem:[%s2 + $0x8] sm:$0xff] %v63
  // Predicated region
  $region6: #{_quantize_fixed_point_stochastic.1} parent=0 // pred_check
    _
  $region7: #{_quantize_fixed_point_stochastic.1} parent=0 // pred_check_branch
    %67 = sbr.rel (0) target = $region9
  $region8: #{_quantize_fixed_point_stochastic.1} parent=0 // pred_region
    _
  $region9: #{_quantize_fixed_point_stochastic.1} parent=0 // pred_fallthru
    _
  // Predicated region
  $region10: #{_quantize_fixed_point_stochastic.1} parent=0 // pred_check
    _
  $region11: #{_quantize_fixed_point_stochastic.1} parent=0 // pred_check_branch
    %69 = sbr.rel (0) target = $region13
  $region12: #{_quantize_fixed_point_stochastic.1} parent=0 // pred_region
    _
  $region13: #{_quantize_fixed_point_stochastic.1} parent=0 // pred_fallthru
    _

</llo_original>
